<compile_context>
chip_gen: v6e
topology: v6e:2x2x1
jax: 0.10.0
libtpu: 0.0.40
codegen_flags: <defaults>
</compile_context>

<pallas_src>
import functools
import inspect

import jax
import jax.numpy as jnp
from jax.experimental import pallas as pl
from jax.experimental.pallas import tpu as pltpu


_LANE = 128
# Conservative working-set budget for our own buffers.  Chosen so the derived
# vmem_limit stays <= ~48 MiB (safe on v7x's 64 MiB VMEM); v5e/v6e (128 MiB) callers
# can raise it via `vmem_budget_bytes`.
_DEFAULT_VMEM_BUDGET = 24 << 20
_VMEM_LIMIT_CAP = 48 << 20
_VMEM_LIMIT_FLOOR = 16 << 20


def _round_up(x, m):
    return ((x + m - 1) // m) * m


def _supports_pipeline_mode():
    try:
        return (hasattr(pl, "Buffered")
                and "pipeline_mode" in inspect.signature(pl.BlockSpec).parameters)
    except (TypeError, ValueError):
        return False


# ---------------------------------------------------------------------------
# Kernels
# ---------------------------------------------------------------------------

def _single_pass_kernel(pr_ref, pc_ref, o_ref, *, inv_temp, n_valid, n_keys, cast_bf16):
    """grid = (row_tiles,): whole key matrix VMEM-resident, plain logsumexp per row."""
    pr = pr_ref[...]                                     # [TM, Dp]
    pc = pc_ref[...]                                     # [Np, Dp] (full, resident)
    a = pr.astype(jnp.bfloat16) if cast_bf16 else pr
    b = pc.astype(jnp.bfloat16) if cast_bf16 else pc
    # Contract last dims of both operands -> p @ p.T on the MXU, no explicit transpose.
    s = jax.lax.dot_general(a, b, (((1,), (1,)), ((), ())),
                            preferred_element_type=jnp.float32)     # [TM, Np] f32
    s = s * jnp.float32(inv_temp)        # scale the f32 logits (hidden behind the exps)
    if n_valid < n_keys:                 # static Python check: only when N was padded
        col = jax.lax.broadcasted_iota(jnp.int32, s.shape, 1)
        s = jnp.where(col < n_valid, s, -jnp.inf)
    m = jnp.max(s, axis=-1, keepdims=True)
    l = jnp.sum(jnp.exp(s - m), axis=-1, keepdims=True)
    # diag(p @ p.T) is just the squared row norm: O(TM*Dp), no NxN masking.
    pr32 = pr.astype(jnp.float32)
    diag = jnp.sum(pr32 * pr32, axis=-1, keepdims=True) * jnp.float32(inv_temp)
    o_ref[...] = m + jnp.log(l) - diag                   # per-row loss contribution


def _tiled_kernel(pr_ref, pc_ref, o_ref, m_sc, l_sc, *,
                  inv_temp, n_valid, n_keys, tn, cast_bf16):
    """grid = (row_tiles, col_tiles); key axis last -> online logsumexp in scratch."""
    j = pl.program_id(1)

    @pl.when(j == 0)
    def _init():
        m_sc[...] = jnp.full(m_sc.shape, -jnp.inf, dtype=jnp.float32)
        l_sc[...] = jnp.zeros(l_sc.shape, dtype=jnp.float32)

    pr = pr_ref[...]                                     # [TM, Dp]
    pc = pc_ref[...]                                     # [TN, Dp]
    a = pr.astype(jnp.bfloat16) if cast_bf16 else pr
    b = pc.astype(jnp.bfloat16) if cast_bf16 else pc
    s = jax.lax.dot_general(a, b, (((1,), (1,)), ((), ())),
                            preferred_element_type=jnp.float32)     # [TM, TN] f32
    s = s * jnp.float32(inv_temp)
    if n_valid < n_keys:                 # static: only when N was padded
        col = j * tn + jax.lax.broadcasted_iota(jnp.int32, s.shape, 1)
        s = jnp.where(col < n_valid, s, -jnp.inf)

    # Online (flash-style) logsumexp across column tiles.
    m_prev = m_sc[...]
    m_new = jnp.maximum(m_prev, jnp.max(s, axis=-1, keepdims=True))
    l_sc[...] = (jnp.exp(m_prev - m_new) * l_sc[...]
                 + jnp.sum(jnp.exp(s - m_new), axis=-1, keepdims=True))
    m_sc[...] = m_new

    @pl.when(j == pl.num_programs(1) - 1)
    def _finalize():
        pr32 = pr.astype(jnp.float32)
        diag = jnp.sum(pr32 * pr32, axis=-1, keepdims=True) * jnp.float32(inv_temp)
        o_ref[...] = m_sc[...] + jnp.log(l_sc[...]) - diag


# ---------------------------------------------------------------------------
# VMEM estimates & tile selection
# ---------------------------------------------------------------------------

def _sp_estimate(tm, n_pad, dp, itemsize):
    key = 2 * n_pad * dp * itemsize          # resident key block (count as double-buffered)
    rows = 2 * tm * dp * itemsize            # double-buffered query row tile
    temps = 3 * tm * n_pad * 4               # f32 logits / exp temporaries
    out = 2 * tm * 4
    return key + rows + temps + out


def _tiled_estimate(tm, tn, dp, itemsize, kbufs):
    keys = kbufs * tn * dp * itemsize        # streamed key tiles (2-3 buffers)
    rows = 2 * tm * dp * itemsize
    temps = 3 * tm * tn * 4
    out = 2 * tm * 4
    scratch = 2 * tm * 4
    return keys + rows + temps + out + scratch


def _pick_row_tile(n_pad, fits):
    divs = [t for t in (1024, 512, 256, 128, 64, 32, 16, 8) if n_pad % t == 0]
    # Prefer grid[0] >= 2 so both v7x TensorCores get work.
    for t in [t for t in divs if 2 * t <= n_pad] + divs:
        if fits(t):
            return t
    return divs[-1] if divs else n_pad        # best effort


def _pick_tiled_tiles(n_pad, dp, itemsize, kbufs, budget):
    tm_cands = [t for t in (2048, 1024, 512, 256, 128, 64, 32, 16, 8) if n_pad % t == 0]
    for tn_cands in ((512, 256), (128,)):     # prefer 256-512 wide key tiles (MXU fill)
        for tm in tm_cands:                   # maximize the resident query tile first
            for tn in tn_cands:
                if n_pad % tn:
                    continue
                if _tiled_estimate(tm, tn, dp, itemsize, kbufs) <= budget:
                    return tm, tn
    return tm_cands[-1], (128 if n_pad % 128 == 0 else n_pad)   # best effort


# ---------------------------------------------------------------------------
# Wrapper
# ---------------------------------------------------------------------------

def contrastive_proto_loss(proto, temperature=0.5, *,
                           vmem_budget_bytes=_DEFAULT_VMEM_BUDGET,
                           use_bf16_matmul=False):
    """Pallas-TPU implementation of Contrastive_proto_loss.forward."""
    n, d = proto.shape
    inv_temp = 1.0 / float(temperature)
    itemsize = jnp.dtype(proto.dtype).itemsize
    cast_bf16 = bool(use_bf16_matmul) and proto.dtype == jnp.float32

    # Lane-pad the feature dim: zeros change neither the dot products nor the row norms.
    dp = _round_up(d, _LANE)

    # ---------- path selection: single-pass (keys VMEM-resident) vs tiled -------------
    n_pad_sp = _round_up(n, _LANE)
    single_pass = (_sp_estimate(min(_LANE, n_pad_sp), n_pad_sp, dp, itemsize)
                   <= vmem_budget_bytes)

    if single_pass:
        n_pad = n_pad_sp
        fits = lambda t: _sp_estimate(t, n_pad, dp, itemsize) <= vmem_budget_bytes
        tm = _pick_row_tile(n_pad, fits)
        grid = (n_pad // tm,)
        est = _sp_estimate(tm, n_pad, dp, itemsize)
        kernel = functools.partial(_single_pass_kernel, inv_temp=inv_temp,
                                   n_valid=n, n_keys=n_pad, cast_bf16=cast_bf16)
        in_specs = [pl.BlockSpec((tm, dp), lambda i: (i, 0)),       # query row tile
                    pl.BlockSpec((n_pad, dp), lambda i: (0, 0))]    # resident key block
        out_specs = pl.BlockSpec((tm, 1), lambda i: (i, 0))
        scratch_shapes = []
        dim_sem = ("parallel",)
        bytes_accessed = 2 * n_pad * dp * itemsize + n_pad * 4
    else:
        n_pad = _round_up(n, 256)            # 256-aligned tiles for v6e/v7x MXU fill
        kbufs = 3 if (_supports_pipeline_mode() and dp <= 512) else 2
        tm, tn = _pick_tiled_tiles(n_pad, dp, itemsize, kbufs, vmem_budget_bytes)
        grid = (n_pad // tm, n_pad // tn)
        est = _tiled_estimate(tm, tn, dp, itemsize, kbufs)
        kernel = functools.partial(_tiled_kernel, inv_temp=inv_temp, n_valid=n,
                                   n_keys=n_pad, tn=tn, cast_bf16=cast_bf16)
        key_spec_kwargs = {}
        if kbufs == 3:
            # Key tile is the only operand whose DMA changes every step; deepen its
            # pipeline in the small-D, memory-bound regime.
            key_spec_kwargs["pipeline_mode"] = pl.Buffered(3)
        in_specs = [pl.BlockSpec((tm, dp), lambda i, j: (i, 0)),                 # query
                    pl.BlockSpec((tn, dp), lambda i, j: (j, 0), **key_spec_kwargs)]  # key
        out_specs = pl.BlockSpec((tm, 1), lambda i, j: (i, 0))
        scratch_shapes = [pltpu.VMEM((tm, 1), jnp.float32),   # running row max
                          pltpu.VMEM((tm, 1), jnp.float32)]   # running row sum-exp
        dim_sem = ("parallel", "arbitrary")
        # Keys are streamed once per row tile; queries once.
        bytes_accessed = (grid[0] + 1) * n_pad * dp * itemsize + n_pad * 4

    if n_pad != n or dp != d:
        proto_p = jnp.pad(proto, ((0, n_pad - n), (0, dp - d)))
    else:
        proto_p = proto

    # v7x-safe VMEM limit derived from the actual buffer estimate (never the full 64 MiB).
    vmem_limit = min(_VMEM_LIMIT_CAP,
                     max(_VMEM_LIMIT_FLOOR, int(est * 1.75) + (4 << 20)))

    per_row = pl.pallas_call(
        kernel,
        out_shape=jax.ShapeDtypeStruct((n_pad, 1), jnp.float32),
        grid_spec=pltpu.PrefetchScalarGridSpec(
            num_scalar_prefetch=0,
            grid=grid,
            in_specs=in_specs,
            out_specs=out_specs,
            scratch_shapes=scratch_shapes),
        compiler_params=pltpu.CompilerParams(
            dimension_semantics=dim_sem,
            vmem_limit_bytes=vmem_limit),
        cost_estimate=pl.CostEstimate(
            flops=2 * n_pad * n_pad * dp,
            transcendentals=n_pad * n_pad,
            bytes_accessed=int(bytes_accessed)),
    )(proto_p, proto_p)

    # Tiny O(N) mean in the wrapper: keeps the row-tile axis megacore-"parallel" and
    # drops padded query rows.  (Lane-dense output layout skipped: output is N floats.)
    return jnp.mean(per_row[:n, 0])


def _reference(proto, temperature=0.5):
    p = proto.astype(jnp.float32)
    sim = (p @ p.T) / temperature
    return jnp.mean(jax.nn.logsumexp(sim, axis=-1) - jnp.diagonal(sim))


if __name__ == "__main__":
    key = jax.random.PRNGKey(0)
    k0, k1 = jax.random.split(key)

    # Case 1: small prototype set (the module's typical input), f32, rows L2-normalized.
    # Exercises the single-pass key-resident path (grid=(2,), padded N=8 -> 128, D=32 -> 128).
    N, D = 8, 32
    proto = jax.random.normal(k0, (N, D), dtype=jnp.float32)
    proto = proto / jnp.linalg.norm(proto, axis=-1, keepdims=True)
    loss = jax.block_until_ready(contrastive_proto_loss(proto, temperature=0.5))
    ref = _reference(proto, temperature=0.5)
    assert jnp.allclose(loss, ref, rtol=2e-5, atol=2e-5), (loss, ref)

    # Case 2: non-aligned N with a deliberately tiny VMEM budget to exercise the tiled
    # online-logsumexp path with padding + column masking (N=1000 -> 1024, grid=(4, 4)).
    N2, D2 = 1000, 48
    proto2 = jax.random.normal(k1, (N2, D2), dtype=jnp.float32)
    proto2 = proto2 / jnp.linalg.norm(proto2, axis=-1, keepdims=True)
    loss2 = jax.block_until_ready(
        contrastive_proto_loss(proto2, temperature=0.5, vmem_budget_bytes=2 << 20))
    ref2 = _reference(proto2, temperature=0.5)
    assert jnp.allclose(loss2, ref2, rtol=2e-5, atol=2e-5), (loss2, ref2)

    print("KERNEL_OK")
</pallas_src>

<mosaic_0001>
module attributes {stable_mosaic.version = 11 : i64} {
  func.func @_single_pass_kernel(%arg0: i32, %arg1: memref<64x128xf32, #tpu.memory_space<vmem>>, %arg2: memref<128x128xf32, #tpu.memory_space<vmem>>, %arg3: memref<64x1xf32, #tpu.memory_space<vmem>>) attributes {dimension_semantics = [#tpu.dimension_semantics<parallel>], iteration_bounds = array<i64: 2>, scalar_prefetch = 0 : i64, scratch_operands = 0 : i64, tpu.core_type = #tpu.core_type<tc>, window_params = [{transform_indices = @transform_0, window_bounds = array<i64: 64, 128>}, {pipeline_mode = #tpu.pipeline_mode<synchronous>, transform_indices = @transform_1, window_bounds = array<i64: 128, 128>}, {transform_indices = @transform_2, window_bounds = array<i64: 64, 1>}]} {
    %c0 = arith.constant 0 : index
    %c0_0 = arith.constant 0 : index
    %0 = vector.load %arg1[%c0, %c0_0] : memref<64x128xf32, #tpu.memory_space<vmem>>, vector<64x128xf32>
    %c0_1 = arith.constant 0 : index
    %c0_2 = arith.constant 0 : index
    %1 = vector.load %arg2[%c0_1, %c0_2] : memref<128x128xf32, #tpu.memory_space<vmem>>, vector<128x128xf32>
    %cst = arith.constant dense<0.000000e+00> : vector<64x128xf32>
    %2 = tpu.matmul %0, %1, %cst {dimension_numbers = #tpu.dot_dimension_numbers<[1], [1], [0], [0], [0, 0, 1, 0], [], []>} : vector<64x128xf32>, vector<128x128xf32>, vector<64x128xf32> -> vector<64x128xf32>
    %cst_3 = arith.constant 2.000000e+00 : f32
    %3 = vector.broadcast %cst_3 : f32 to vector<64x128xf32>
    %4 = arith.mulf %2, %3 : vector<64x128xf32>
    %5 = tpu.iota {dimensions = array<i32: 1>} : vector<64x128xi32>
    %c8_i32 = arith.constant 8 : i32
    %6 = vector.broadcast %c8_i32 : i32 to vector<64x128xi32>
    %7 = arith.cmpi slt, %5, %6 : vector<64x128xi32>
    %cst_4 = arith.constant 0xFF800000 : f32
    %8 = vector.broadcast %cst_4 : f32 to vector<64x128xf32>
    %9 = arith.select %7, %4, %8 : vector<64x128xi1>, vector<64x128xf32>
    %cst_5 = arith.constant dense<0xFF800000> : vector<64xf32>
    %10 = vector.multi_reduction <maximumf>, %9, %cst_5 [1] : vector<64x128xf32> to vector<64xf32>
    %11 = vector.shape_cast %10 : vector<64xf32> to vector<64x1xf32>
    %12 = vector.broadcast %11 : vector<64x1xf32> to vector<64x128xf32>
    %13 = arith.subf %9, %12 : vector<64x128xf32>
    %14 = math.exp %13 : vector<64x128xf32>
    %cst_6 = arith.constant dense<0.000000e+00> : vector<64xf32>
    %15 = vector.multi_reduction <add>, %14, %cst_6 [1] : vector<64x128xf32> to vector<64xf32>
    %16 = vector.shape_cast %15 : vector<64xf32> to vector<64x1xf32>
    %17 = arith.mulf %0, %0 : vector<64x128xf32>
    %cst_7 = arith.constant dense<0.000000e+00> : vector<64xf32>
    %18 = vector.multi_reduction <add>, %17, %cst_7 [1] : vector<64x128xf32> to vector<64xf32>
    %19 = vector.shape_cast %18 : vector<64xf32> to vector<64x1xf32>
    %cst_8 = arith.constant 2.000000e+00 : f32
    %20 = vector.broadcast %cst_8 : f32 to vector<64x1xf32>
    %21 = arith.mulf %19, %20 : vector<64x1xf32>
    %22 = math.log %16 : vector<64x1xf32>
    %23 = arith.addf %11, %22 : vector<64x1xf32>
    %24 = arith.subf %23, %21 : vector<64x1xf32>
    %c0_9 = arith.constant 0 : index
    %c0_10 = arith.constant 0 : index
    %25 = vector.load %arg3[%c0_9, %c0_10] : memref<64x1xf32, #tpu.memory_space<vmem>>, vector<64x1xf32>
    tpu.vector_store %arg3[%c0_9, %c0_10], %24 {strides = array<i32>} : memref<64x1xf32, #tpu.memory_space<vmem>>, vector<64x1xf32>,
    return
  }
  func.func @transform_0(%arg0: i32) -> (i32, i32) {
    %c0_i32 = arith.constant 0 : i32
    %c0_i32_0 = arith.constant 0 : i32
    return %arg0, %c0_i32 : i32, i32
  }
  func.func @transform_1(%arg0: i32) -> (i32, i32) {
    %c0_i32 = arith.constant 0 : i32
    %c0_i32_0 = arith.constant 0 : i32
    %c0_i32_1 = arith.constant 0 : i32
    return %c0_i32, %c0_i32_0 : i32, i32
  }
  func.func @transform_2(%arg0: i32) -> (i32, i32) {
    %c0_i32 = arith.constant 0 : i32
    %c0_i32_0 = arith.constant 0 : i32
    return %arg0, %c0_i32 : i32, i32
  }
}

</mosaic_0001>

<llo_original>
// kernel: tpu_custom_call.1
$region0: #{tpu_custom_call.1}
  #allocation0 [shape = 'u32[]', space=smem, size = 0x4, offset = 0x4, fixed_abs, tag = 'smem constant byte address 0x4 - core index']
  #allocation1 [shape = 'u32[144,128]{1,0:T(1,128)}', space=vmem, size = 0x12000, scoped, tag = 'internal scratch']
  %s0 = inlined_call_operand.hbm [shape: f32[128,128], index: 0, kind: input, shape index: {}]
  %s1 = inlined_call_operand.hbm [shape: f32[128,128], index: 1, kind: input, shape index: {}]
  %s2 = inlined_call_operand.vmem [shape: f32[128,1], index: 2, kind: output, shape index: {}]
  %s3 = sld [smem:[#allocation0]]
  $region49: #{tpu_custom_call.1} parent=0
    _
  %s5 = ssub.s32 1, %s3
  %s6 = scalar_select 0, %s5, %s3
  $region1: #{tpu_custom_call.1} parent=0
    #allocation2 [shape = 'u8[65536]{0}', space=vmem, size = 0x10000, scoped, tag = 'input window, operand 0']
    #allocation3 [shape = 's32[2]{0}', space=sflag, size = 0x8, scoped, tag = 'scoped memory for tpu_custom_call.1']
    #allocation4 [shape = 'u8[65536]{0}', space=vmem, size = 0x10000, scoped, tag = 'input window, operand 1, single buffered']
    #allocation5 [shape = 's32[1]{0}', space=sflag, size = 0x4, scoped, tag = 'scoped memory for tpu_custom_call.1']
    %7 = vsyncpa [#allocation3], 0
    %s8 = scalar_lea.sflag [#allocation3], 1
    %9 = vsyncpa %s8, 0
    %10 = vsyncpa [#allocation5], 0
    loop: start=0, step=1, limit=4
    $region2: #{tpu_custom_call.1} parent=1 // loop_pre_header
      _
    $region3: #{tpu_custom_call.1} parent=1 // loop_header
      %s12 = sphi 0, %s16
      %p13 = scmp.ge.s32.totalorder %s12, 4
      %s22 = sphi 0, %s24
      %s25 = sphi 0, %s22
      %s26 = sphi 0, %s25
      %s42 = sphi 0, %s26
      %s46 = sphi 0, %s46
      %s48 = sphi 0, %s46
      %s49 = sphi 0, %s48
      %s63 = sphi 0, %s49
      %s69 = sphi 0, %s71
      %s72 = sphi 0, %s69
      %s73 = sphi 0, %s72
      %s89 = sphi 0, %s73
    $region4: #{tpu_custom_call.1} parent=1 // loop_header_branch
      %15 = sbr.rel (%p13) target = $region8
    $region5: #{tpu_custom_call.1} parent=1 // loop_body
      %s17 = ssub.s32 %s12, 1
      %s18 = ssub.s32 %s12, 2
      %s19 = sadd.s32 %s12, 1
      %s20 = ssub.s32 %s12, %s19
      %p21 = scmp.eq.s32.totalorder %s20, 0
      %s23 = sadd.s32 %s22, 1
      %s24 = scalar_select %p21, %s22, %s23
      %p27 = pneg %p21
      %p28 = scmp.eq.s32.totalorder %s12, 1
      %p29 = por %p27, %p28
      %p30 = scmp.ne.s32.totalorder %s22, %s25
      %p31 = scmp.eq.s32.totalorder %s12, 0
      %p32 = por %p30, %p31
      %p33 = scmp.ne.s32.totalorder %s22, %s25
      %p34 = scmp.eq.s32.totalorder %s17, 1
      %p35 = por %p33, %p34
      %p36 = scmp.ne.s32.totalorder %s25, %s26
      %p37 = scmp.eq.s32.totalorder %s17, 0
      %p38 = por %p36, %p37
      %p39 = scmp.ne.s32.totalorder %s25, %s26
      %p40 = scmp.eq.s32.totalorder %s18, 1
      %p41 = por %p39, %p40
      %p43 = scmp.ne.s32.totalorder %s26, %s42
      %p44 = scmp.eq.s32.totalorder %s18, 0
      %p45 = por %p43, %p44
      %s47 = sadd.s32 %s46, 1
      %p50 = scmp.eq.s32.totalorder %s12, 1
      %p51 = scmp.ne.s32.totalorder %s46, %s48
      %p52 = scmp.eq.s32.totalorder %s12, 0
      %p53 = por %p51, %p52
      %p54 = scmp.ne.s32.totalorder %s46, %s48
      %p55 = scmp.eq.s32.totalorder %s17, 1
      %p56 = por %p54, %p55
      %p57 = scmp.ne.s32.totalorder %s48, %s49
      %p58 = scmp.eq.s32.totalorder %s17, 0
      %p59 = por %p57, %p58
      %p60 = scmp.ne.s32.totalorder %s48, %s49
      %p61 = scmp.eq.s32.totalorder %s18, 1
      %p62 = por %p60, %p61
      %p64 = scmp.ne.s32.totalorder %s49, %s63
      %p65 = scmp.eq.s32.totalorder %s18, 0
      %p66 = por %p64, %p65
      %s67 = ssub.s32 %s12, %s19
      %p68 = scmp.eq.s32.totalorder %s67, 0
      %s70 = sadd.s32 %s69, 1
      %s71 = scalar_select %p68, %s69, %s70
      %p74 = pneg %p68
      %p75 = scmp.eq.s32.totalorder %s12, 1
      %p76 = por %p74, %p75
      %p77 = scmp.ne.s32.totalorder %s69, %s72
      %p78 = scmp.eq.s32.totalorder %s12, 0
      %p79 = por %p77, %p78
      %p80 = scmp.ne.s32.totalorder %s69, %s72
      %p81 = scmp.eq.s32.totalorder %s17, 1
      %p82 = por %p80, %p81
      %p83 = scmp.ne.s32.totalorder %s72, %s73
      %p84 = scmp.eq.s32.totalorder %s17, 0
      %p85 = por %p83, %p84
      %p86 = scmp.ne.s32.totalorder %s72, %s73
      %p87 = scmp.eq.s32.totalorder %s18, 1
      %p88 = por %p86, %p87
      %p90 = scmp.ne.s32.totalorder %s73, %s89
      %p91 = scmp.eq.s32.totalorder %s18, 0
      %p92 = por %p90, %p91
      %p93 = scmp.le.s32.totalorder 1, %s12
      %p94 = scmp.lt.s32.totalorder %s12, 3
      %p95 = pnand %p93, %p94
      %p96 = pneg %p95
      // Predicated region
      $region9: #{tpu_custom_call.1} parent=5 // pred_check
        _
      $region10: #{tpu_custom_call.1} parent=5 // pred_check_branch
        %98 = sbr.rel (%p95) target = $region12
      $region11: #{tpu_custom_call.1} parent=5 // pred_region
        %s99 = ssub.s32 %s12, 1
        // Predicated region
        $region13: #{tpu_custom_call.1} parent=11 // pred_check
          %p100 = pneg %p59
        $region14: #{tpu_custom_call.1} parent=11 // pred_check_branch
          %102 = sbr.rel (%p100) target = $region16
        $region15: #{tpu_custom_call.1} parent=11 // pred_region
          %s104 = ssub.s32 2048, 2048
          %105 = vsyncadd [#allocation5], %s104
          %s106 = sshll.u32 [#allocation4], 4
          %s107 = int_to_ptr.vmem [resolvable:$true] %s106
          %112 = dma.hbm_to_vmem [thread:$0]  %s1, 2048, %s107, [#allocation5], 128, 128, 8
        $region16: #{tpu_custom_call.1} parent=11 // pred_fallthru
          _
      $region12: #{tpu_custom_call.1} parent=5 // pred_fallthru
        _
      %p113 = scmp.lt.s32.totalorder %s12, 2
      // Predicated region
      $region17: #{tpu_custom_call.1} parent=5 // pred_check
        %p114 = pneg %p113
      $region18: #{tpu_custom_call.1} parent=5 // pred_check_branch
        %116 = sbr.rel (%p114) target = $region20
      $region19: #{tpu_custom_call.1} parent=5 // pred_region
        // Predicated region
        $region21: #{tpu_custom_call.1} parent=19 // pred_check
          %p117 = pneg %p32
        $region22: #{tpu_custom_call.1} parent=19 // pred_check_branch
          %119 = sbr.rel (%p117) target = $region24
        $region23: #{tpu_custom_call.1} parent=19 // pred_region
          %s120 = sand.u32 %s22, 1
          %s121 = scalar_lea.sflag [#allocation3], %s120
          %s122 = sand.u32 %s22, 1
          %s123 = smul.addr %s122, 64
          %s124 = scalar_lea.vmem [#allocation2], %s123
          %s125 = smul.u32 8, %s12
          %s127 = ssub.s32 1024, 1024
          %128 = vsyncadd %s121, %s127
          %s129 = smul.addr %s125, 128
          %s130 = scalar_lea.hbm %s0, %s129
          %s131 = sshll.u32 %s124, 4
          %s132 = int_to_ptr.vmem [resolvable:$true] %s131
          %137 = dma.hbm_to_vmem [thread:$0]  %s130, 1024, %s132, %s121, 128, 128, 8
        $region24: #{tpu_custom_call.1} parent=19 // pred_fallthru
          _
      $region20: #{tpu_custom_call.1} parent=5 // pred_fallthru
        _
      %p138 = scmp.le.s32.totalorder 1, %s12
      %p139 = scmp.lt.s32.totalorder %s12, 3
      %p140 = pnand %p138, %p139
      %p141 = pneg %p140
      // Predicated region
      $region25: #{tpu_custom_call.1} parent=5 // pred_check
        _
      $region26: #{tpu_custom_call.1} parent=5 // pred_check_branch
        %143 = sbr.rel (%p140) target = $region28
      $region27: #{tpu_custom_call.1} parent=5 // pred_region
        %s144 = ssub.s32 %s12, 1
        %s145 = sand.u32 %s25, 1
        %s146 = scalar_lea.sflag [#allocation3], %s145
        %s147 = sand.u32 %s25, 1
        %s148 = smul.addr %s147, 64
        %s149 = scalar_lea.vmem [#allocation2], %s148
        // Predicated region
        $region29: #{tpu_custom_call.1} parent=27 // pred_check
          %p150 = pneg %p38
        $region30: #{tpu_custom_call.1} parent=27 // pred_check_branch
          %152 = sbr.rel (%p150) target = $region32
        $region31: #{tpu_custom_call.1} parent=27 // pred_region
          %153 = dma.done %s146, 1024
        $region32: #{tpu_custom_call.1} parent=27 // pred_fallthru
          _
        // Predicated region
        $region33: #{tpu_custom_call.1} parent=27 // pred_check
          %p154 = pneg %p59
        $region34: #{tpu_custom_call.1} parent=27 // pred_check_branch
          %156 = sbr.rel (%p154) target = $region36
        $region35: #{tpu_custom_call.1} parent=27 // pred_region
          %157 = dma.done [#allocation5], 2048
        $region36: #{tpu_custom_call.1} parent=27 // pred_fallthru
          _
        %s158 = sand.u32 %s25, 1
        %s159 = scalar_lea.sflag [#allocation3], %s158
        %s160 = sand.u32 %s25, 1
        %s161 = smul.addr %s160, 64
        %s162 = scalar_lea.vmem [#allocation2], %s161
        %p163 = pneg %p38
        %p164 = pneg %p35
        %p165 = pneg %p59
        %p166 = pneg %p56
        %p167 = pneg %p85
        %p168 = pneg %p82
        %s169 = smul.u32 8, %s17
        %p170 = scmp.lt.s32.totalorder %s169, 15
        %s171 = scalar_select %p170, %s169, 15
        %s172 = smul.addr %s171, 8
        %s173 = scalar_lea.vmem %s2, %s172
        %s174 = smul.u32 8, %s17
        %s175 = smul.u32 8, %s17
        %p176 = scmp.lt.s32.totalorder %s175, 15
        %s177 = scalar_select %p176, %s175, 15
        %s178 = smul.addr %s177, 8
        %s179 = scalar_lea.vmem %s2, %s178
        %s180 = smul.u32 8, %s17
        %v181 = vld [vmem:[%s149] sm:$0xff]
        %v182 = vld [vmem:[%s149 + $0x8] sm:$0xff]
        %v183 = vld [vmem:[%s149 + $0x10] sm:$0xff]
        %v184 = vld [vmem:[%s149 + $0x18] sm:$0xff]
        %v185 = vld [vmem:[%s149 + $0x20] sm:$0xff]
        %v186 = vld [vmem:[%s149 + $0x28] sm:$0xff]
        %v187 = vld [vmem:[%s149 + $0x30] sm:$0xff]
        %v188 = vld [vmem:[%s149 + $0x38] sm:$0xff]
        %v189 = vld [vmem:[#allocation4] sm:$0xff]
        %v190 = vld [vmem:[#allocation4 + $0x8] sm:$0xff]
        %v191 = vld [vmem:[#allocation4 + $0x10] sm:$0xff]
        %v192 = vld [vmem:[#allocation4 + $0x18] sm:$0xff]
        %v193 = vld [vmem:[#allocation4 + $0x20] sm:$0xff]
        %v194 = vld [vmem:[#allocation4 + $0x28] sm:$0xff]
        %v195 = vld [vmem:[#allocation4 + $0x30] sm:$0xff]
        %v196 = vld [vmem:[#allocation4 + $0x38] sm:$0xff]
        %v197 = vld [vmem:[#allocation4 + $0x40] sm:$0xff]
        %v198 = vld [vmem:[#allocation4 + $0x48] sm:$0xff]
        %v199 = vld [vmem:[#allocation4 + $0x50] sm:$0xff]
        %v200 = vld [vmem:[#allocation4 + $0x58] sm:$0xff]
        %v201 = vld [vmem:[#allocation4 + $0x60] sm:$0xff]
        %v202 = vld [vmem:[#allocation4 + $0x68] sm:$0xff]
        %v203 = vld [vmem:[#allocation4 + $0x70] sm:$0xff]
        %v204 = vld [vmem:[#allocation4 + $0x78] sm:$0xff]
        %205 = vmatprep.subr.mxu0 0.0
        %206 = vmatpush1.xpose.msra.mxu0 %v204
        %207 = vmatprep.subr.mxu0 0.0
        %208 = vmatpush1.xpose.msra.mxu0 %v203
        %209 = vmatprep.subr.mxu0 0.0
        %210 = vmatpush1.xpose.msra.mxu0 %v202
        %211 = vmatprep.subr.mxu0 0.0
        %212 = vmatpush1.xpose.msra.mxu0 %v201
        %213 = vmatprep.subr.mxu0 0.0
        %214 = vmatpush1.xpose.msra.mxu0 %v200
        %215 = vmatprep.subr.mxu0 0.0
        %216 = vmatpush1.xpose.msra.mxu0 %v199
        %217 = vmatprep.subr.mxu0 0.0
        %218 = vmatpush1.xpose.msra.mxu0 %v198
        %219 = vmatprep.subr.mxu0 0.0
        %220 = vmatpush1.xpose.msra.mxu0 %v197
        %221 = vmatprep.subr.mxu0 0.0
        %222 = vmatpush1.xpose.msra.mxu0 %v196
        %223 = vmatprep.subr.mxu0 0.0
        %224 = vmatpush1.xpose.msra.mxu0 %v195
        %225 = vmatprep.subr.mxu0 0.0
        %226 = vmatpush1.xpose.msra.mxu0 %v194
        %227 = vmatprep.subr.mxu0 0.0
        %228 = vmatpush1.xpose.msra.mxu0 %v193
        %229 = vmatprep.subr.mxu0 0.0
        %230 = vmatpush1.xpose.msra.mxu0 %v192
        %231 = vmatprep.subr.mxu0 0.0
        %232 = vmatpush1.xpose.msra.mxu0 %v191
        %233 = vmatprep.subr.mxu0 0.0
        %234 = vmatpush1.xpose.msra.mxu0 %v190
        %235 = vmatprep.subr.mxu0 0.0
        %236 = vmatpush1.xpose.msra.mxu0 %v189
        %237 = vmatprep.subr.mxu0 0.0
        %238 = vmatpush2.xpose.msra.mxu0 0.0
        %239 = vmatprep.subr.mxu0 0.0
        %240 = vmatpush2.xpose.msra.mxu0 0.0
        %241 = vmatprep.subr.mxu0 0.0
        %242 = vmatpush2.xpose.msra.mxu0 0.0
        %243 = vmatprep.subr.mxu0 0.0
        %244 = vmatpush2.xpose.msra.mxu0 0.0
        %245 = vmatprep.subr.mxu0 0.0
        %246 = vmatpush2.xpose.msra.mxu0 0.0
        %247 = vmatprep.subr.mxu0 0.0
        %248 = vmatpush2.xpose.msra.mxu0 0.0
        %249 = vmatprep.subr.mxu0 0.0
        %250 = vmatpush2.xpose.msra.mxu0 0.0
        %251 = vmatprep.subr.mxu0 0.0
        %252 = vmatpush2.xpose.msra.mxu0 0.0
        %253 = vmatprep.subr.mxu0 0.0
        %254 = vmatpush2.xpose.msra.mxu0 0.0
        %255 = vmatprep.subr.mxu0 0.0
        %256 = vmatpush2.xpose.msra.mxu0 0.0
        %257 = vmatprep.subr.mxu0 0.0
        %258 = vmatpush2.xpose.msra.mxu0 0.0
        %259 = vmatprep.subr.mxu0 0.0
        %260 = vmatpush2.xpose.msra.mxu0 0.0
        %261 = vmatprep.subr.mxu0 0.0
        %262 = vmatpush2.xpose.msra.mxu0 0.0
        %263 = vmatprep.subr.mxu0 0.0
        %264 = vmatpush2.xpose.msra.mxu0 0.0
        %265 = vmatprep.subr.mxu0 0.0
        %266 = vmatpush2.xpose.msra.mxu0 0.0
        %267 = vmatprep.subr.mxu0 0.0
        %268 = vmatpush2.xpose.msra.mxu0 0.0
        %269 = vmatprep.mubr.f32.mxu0 0.0
        %270 = vmatmul.mubr.f32.gmra.mxu0 %v181
        %v271 = vpop.f32.mrf.mxu0
        %v272 = vadd.f32 0.0, %v271
        %v273 = vpop.f32.mrf.mxu0
        %274 = vmatprep.mubr.f32.mxu0 0.0
        %275 = vmatmul.mubr.f32.gmra.mxu0 %v182
        %v276 = vpop.f32.mrf.mxu0
        %v277 = vadd.f32 0.0, %v276
        %v278 = vpop.f32.mrf.mxu0
        %279 = vmatprep.mubr.f32.mxu0 0.0
        %280 = vmatmul.mubr.f32.gmra.mxu0 %v183
        %v281 = vpop.f32.mrf.mxu0
        %v282 = vadd.f32 0.0, %v281
        %v283 = vpop.f32.mrf.mxu0
        %284 = vmatprep.mubr.f32.mxu0 0.0
        %285 = vmatmul.mubr.f32.gmra.mxu0 %v184
        %v286 = vpop.f32.mrf.mxu0
        %v287 = vadd.f32 0.0, %v286
        %v288 = vpop.f32.mrf.mxu0
        %289 = vmatprep.mubr.f32.mxu0 0.0
        %290 = vmatmul.mubr.f32.gmra.mxu0 %v185
        %v291 = vpop.f32.mrf.mxu0
        %v292 = vadd.f32 0.0, %v291
        %v293 = vpop.f32.mrf.mxu0
        %294 = vmatprep.mubr.f32.mxu0 0.0
        %295 = vmatmul.mubr.f32.gmra.mxu0 %v186
        %v296 = vpop.f32.mrf.mxu0
        %v297 = vadd.f32 0.0, %v296
        %v298 = vpop.f32.mrf.mxu0
        %299 = vmatprep.mubr.f32.mxu0 0.0
        %300 = vmatmul.mubr.f32.gmra.mxu0 %v187
        %v301 = vpop.f32.mrf.mxu0
        %v302 = vadd.f32 0.0, %v301
        %v303 = vpop.f32.mrf.mxu0
        %304 = vmatprep.mubr.f32.mxu0 0.0
        %305 = vmatmul.mubr.f32.gmra.mxu0 %v188
        %v306 = vpop.f32.mrf.mxu0
        %v307 = vadd.f32 0.0, %v306
        %v308 = vpop.f32.mrf.mxu0
        %309 = vdwg.mxu0
        %v310 = vmul.f32 %v272, 2.0
        %v311 = vmul.f32 %v277, 2.0
        %v312 = vmul.f32 %v282, 2.0
        %v313 = vmul.f32 %v287, 2.0
        %v314 = vmul.f32 %v292, 2.0
        %v315 = vmul.f32 %v297, 2.0
        %v316 = vmul.f32 %v302, 2.0
        %v317 = vmul.f32 %v307, 2.0
        %v318 = vlaneseq
        %v319 = vand.u32 %v318, 127
        %vm320 = vcmp.lt.s32.totalorder %v319, 8
        %v321 = vsel %vm320, %v310, -inf
        %v322 = vsel %vm320, %v311, -inf
        %v323 = vsel %vm320, %v312, -inf
        %v324 = vsel %vm320, %v313, -inf
        %v325 = vsel %vm320, %v314, -inf
        %v326 = vsel %vm320, %v315, -inf
        %v327 = vsel %vm320, %v316, -inf
        %v328 = vsel %vm320, %v317, -inf
        %329 = vmax.xlane.f32.xlu0 %v321
        %v330 = vpop.xlane.xlu0 %329
        %331 = vmax.xlane.f32.xlu0 %v322
        %v332 = vpop.xlane.xlu0 %331
        %333 = vmax.xlane.f32.xlu0 %v323
        %v334 = vpop.xlane.xlu0 %333
        %335 = vmax.xlane.f32.xlu0 %v324
        %v336 = vpop.xlane.xlu0 %335
        %337 = vmax.xlane.f32.xlu0 %v325
        %v338 = vpop.xlane.xlu0 %337
        %339 = vmax.xlane.f32.xlu0 %v326
        %v340 = vpop.xlane.xlu0 %339
        %341 = vmax.xlane.f32.xlu0 %v327
        %v342 = vpop.xlane.xlu0 %341
        %343 = vmax.xlane.f32.xlu0 %v328
        %v344 = vpop.xlane.xlu0 %343
        %v345 = vsub.f32 %v321, %v330
        %v346 = vsub.f32 %v322, %v332
        %v347 = vsub.f32 %v323, %v334
        %v348 = vsub.f32 %v324, %v336
        %v349 = vsub.f32 %v325, %v338
        %v350 = vsub.f32 %v326, %v340
        %v351 = vsub.f32 %v327, %v342
        %v352 = vsub.f32 %v328, %v344
        %v353 = vmul.f32 %v345, 1.442695
        %v354 = vpow.pop %v353
        %v355 = vmul.f32 %v346, 1.442695
        %v356 = vpow.pop %v355
        %v357 = vmul.f32 %v347, 1.442695
        %v358 = vpow.pop %v357
        %v359 = vmul.f32 %v348, 1.442695
        %v360 = vpow.pop %v359
        %v361 = vmul.f32 %v349, 1.442695
        %v362 = vpow.pop %v361
        %v363 = vmul.f32 %v350, 1.442695
        %v364 = vpow.pop %v363
        %v365 = vmul.f32 %v351, 1.442695
        %v366 = vpow.pop %v365
        %v367 = vmul.f32 %v352, 1.442695
        %v368 = vpow.pop %v367
        %369 = vadd.xlane.f32.xlu0 %v354
        %v370 = vpop.xlane.xlu0 %369
        %371 = vadd.xlane.f32.xlu0 %v356
        %v372 = vpop.xlane.xlu0 %371
        %373 = vadd.xlane.f32.xlu0 %v358
        %v374 = vpop.xlane.xlu0 %373
        %375 = vadd.xlane.f32.xlu0 %v360
        %v376 = vpop.xlane.xlu0 %375
        %377 = vadd.xlane.f32.xlu0 %v362
        %v378 = vpop.xlane.xlu0 %377
        %379 = vadd.xlane.f32.xlu0 %v364
        %v380 = vpop.xlane.xlu0 %379
        %381 = vadd.xlane.f32.xlu0 %v366
        %v382 = vpop.xlane.xlu0 %381
        %383 = vadd.xlane.f32.xlu0 %v368
        %v384 = vpop.xlane.xlu0 %383
        %v385 = vmul.f32 %v181, %v181
        %v386 = vmul.f32 %v182, %v182
        %v387 = vmul.f32 %v183, %v183
        %v388 = vmul.f32 %v184, %v184
        %v389 = vmul.f32 %v185, %v185
        %v390 = vmul.f32 %v186, %v186
        %v391 = vmul.f32 %v187, %v187
        %v392 = vmul.f32 %v188, %v188
        %393 = vadd.xlane.f32.xlu0 %v385
        %v394 = vpop.xlane.xlu0 %393
        %395 = vadd.xlane.f32.xlu0 %v386
        %v396 = vpop.xlane.xlu0 %395
        %397 = vadd.xlane.f32.xlu0 %v387
        %v398 = vpop.xlane.xlu0 %397
        %399 = vadd.xlane.f32.xlu0 %v388
        %v400 = vpop.xlane.xlu0 %399
        %401 = vadd.xlane.f32.xlu0 %v389
        %v402 = vpop.xlane.xlu0 %401
        %403 = vadd.xlane.f32.xlu0 %v390
        %v404 = vpop.xlane.xlu0 %403
        %405 = vadd.xlane.f32.xlu0 %v391
        %v406 = vpop.xlane.xlu0 %405
        %407 = vadd.xlane.f32.xlu0 %v392
        %v408 = vpop.xlane.xlu0 %407
        %v409 = vmul.f32 %v394, 2.0
        %v410 = vmul.f32 %v396, 2.0
        %v411 = vmul.f32 %v398, 2.0
        %v412 = vmul.f32 %v400, 2.0
        %v413 = vmul.f32 %v402, 2.0
        %v414 = vmul.f32 %v404, 2.0
        %v415 = vmul.f32 %v406, 2.0
        %v416 = vmul.f32 %v408, 2.0
        %v417 = vlog2.pop %v370
        %v418 = vmul.f32 %v417, 0.6931472
        %v419 = vlog2.pop %v372
        %v420 = vmul.f32 %v419, 0.6931472
        %v421 = vlog2.pop %v374
        %v422 = vmul.f32 %v421, 0.6931472
        %v423 = vlog2.pop %v376
        %v424 = vmul.f32 %v423, 0.6931472
        %v425 = vlog2.pop %v378
        %v426 = vmul.f32 %v425, 0.6931472
        %v427 = vlog2.pop %v380
        %v428 = vmul.f32 %v427, 0.6931472
        %v429 = vlog2.pop %v382
        %v430 = vmul.f32 %v429, 0.6931472
        %v431 = vlog2.pop %v384
        %v432 = vmul.f32 %v431, 0.6931472
        %v433 = vadd.f32 %v330, %v418
        %v434 = vadd.f32 %v332, %v420
        %v435 = vadd.f32 %v334, %v422
        %v436 = vadd.f32 %v336, %v424
        %v437 = vadd.f32 %v338, %v426
        %v438 = vadd.f32 %v340, %v428
        %v439 = vadd.f32 %v342, %v430
        %v440 = vadd.f32 %v344, %v432
        %v441 = vsub.f32 %v433, %v409
        %v442 = vsub.f32 %v434, %v410
        %v443 = vsub.f32 %v435, %v411
        %v444 = vsub.f32 %v436, %v412
        %v445 = vsub.f32 %v437, %v413
        %v446 = vsub.f32 %v438, %v414
        %v447 = vsub.f32 %v439, %v415
        %v448 = vsub.f32 %v440, %v416
        %vm449 = vcmask 7168
        %450 = vst.msk [vmem:[%s179] sm:$0xff] %vm449, %v441
        %451 = vst.msk [vmem:[%s179 + $0x8] sm:$0xff] %vm449, %v442
        %452 = vst.msk [vmem:[%s179 + $0x10] sm:$0xff] %vm449, %v443
        %453 = vst.msk [vmem:[%s179 + $0x18] sm:$0xff] %vm449, %v444
        %454 = vst.msk [vmem:[%s179 + $0x20] sm:$0xff] %vm449, %v445
        %455 = vst.msk [vmem:[%s179 + $0x28] sm:$0xff] %vm449, %v446
        %456 = vst.msk [vmem:[%s179 + $0x30] sm:$0xff] %vm449, %v447
        %457 = vst.msk [vmem:[%s179 + $0x38] sm:$0xff] %vm449, %v448
        %s458 = smul.u32 8, %s17
        %p459 = scmp.lt.s32.totalorder %s458, 15
        %s460 = scalar_select %p459, %s458, 15
        %s461 = smul.addr %s460, 8
        %s462 = scalar_lea.vmem %s2, %s461
        // Predicated region
        $region37: #{tpu_custom_call.1} parent=27 // pred_check
          %p463 = pneg %p82
        $region38: #{tpu_custom_call.1} parent=27 // pred_check_branch
          %465 = sbr.rel (%p463) target = $region40
        $region39: #{tpu_custom_call.1} parent=27 // pred_region
          %s466 = smul.u32 8, %s17
        $region40: #{tpu_custom_call.1} parent=27 // pred_fallthru
          _
      $region28: #{tpu_custom_call.1} parent=5 // pred_fallthru
        _
      %p467 = scmp.le.s32.totalorder 2, %s12
      // Predicated region
      $region41: #{tpu_custom_call.1} parent=5 // pred_check
        %p468 = pneg %p467
      $region42: #{tpu_custom_call.1} parent=5 // pred_check_branch
        %470 = sbr.rel (%p468) target = $region44
      $region43: #{tpu_custom_call.1} parent=5 // pred_region
        %s471 = ssub.s32 %s12, 2
        // Predicated region
        $region45: #{tpu_custom_call.1} parent=43 // pred_check
          %p472 = pneg %p88
        $region46: #{tpu_custom_call.1} parent=43 // pred_check_branch
          %474 = sbr.rel (%p472) target = $region48
        $region47: #{tpu_custom_call.1} parent=43 // pred_region
          %s475 = smul.u32 8, %s18
          %p476 = scmp.lt.s32.totalorder %s475, 15
          %s477 = scalar_select %p476, %s475, 15
          %s478 = smul.addr %s477, 8
          %s479 = scalar_lea.vmem %s2, %s478
        $region48: #{tpu_custom_call.1} parent=43 // pred_fallthru
          _
      $region44: #{tpu_custom_call.1} parent=5 // pred_fallthru
        _
    $region6: #{tpu_custom_call.1} parent=1 // loop_footer
      %s16 = sadd.s32 1, %s12
    $region7: #{tpu_custom_call.1} parent=1 // loop_footer_branch
      %11 = sbr.rel target = $region3
    $region8: #{tpu_custom_call.1} parent=1 // loop_exit
      _
    %480 = vsyncpa [#allocation3], 1
    %s481 = scalar_lea.sflag [#allocation3], 1
    %482 = vsyncpa %s481, 1
    %483 = vsyncpa [#allocation5], 1

</llo_original>
